<compile_context>
chip_gen: v7x
topology: tpu7x:2x2x1
jax: 0.10.0
libtpu: 0.0.40
codegen_flags: <defaults>
</compile_context>

<pallas_src>
import jax
import jax.numpy as jnp
from jax.experimental import pallas as pl
from jax.experimental.pallas import tpu as pltpu


def _round_up(x, m):
    return ((x + m - 1) // m) * m


def _pick_tile(n, candidates=(512, 256, 128)):
    # n is a multiple of 128, so the last candidate always divides.
    for c in candidates:
        if n % c == 0:
            return c
    return n


def _propagate_kernel(a_ref, yb_ref, yf_ref, c_ref, o_ref):
    """o[i,f] (+)= A'[g, i-tile, k-tile] @ Yb[k-tile, f-tile].

    Grid = (row tiles, feature tiles, graphs, contraction tiles).  The last two
    axes are sequential reduction axes; the output block stays resident across
    them and is used directly as the f32 accumulator.  The per-node epilogue
    ycoef * Y is folded into the accumulator init on the first (g, k) step.
    """
    g = pl.program_id(2)
    k = pl.program_id(3)

    @pl.when(jnp.logical_and(g == 0, k == 0))
    def _():
        o_ref[...] = c_ref[...] * yf_ref[...]

    o_ref[...] += jnp.dot(a_ref[0], yb_ref[...],
                          preferred_element_type=jnp.float32)


def propagate(Y, A0, deg0, sub_As, D_list, alp, lam0, lam, lam_K, K):
    """Pallas version of Propagate.forward.

    sub_As non-empty -> the `if g_list:` branch (graph = (g0, [g_i...])).
    sub_As empty     -> the `else:` branch.
    """
    Y = jnp.asarray(Y, jnp.float32)
    N, F = Y.shape
    S = len(sub_As)
    G = 1 + S

    deg0 = jnp.asarray(deg0, jnp.float32).reshape(N, 1)
    D0 = jnp.asarray(D_list[0], jnp.float32).reshape(N, 1)
    if S > 0:
        D1 = jnp.sum(jnp.stack([jnp.asarray(d, jnp.float32).reshape(N, 1)
                                for d in D_list[1:]], axis=-1), axis=-1)
        denom = D0 + D1
        sig = jax.nn.sigmoid(jnp.asarray(lam_K, jnp.float32).reshape(-1)[:S])
    else:
        D1 = jnp.ones((N, 1), jnp.float32)
        denom = D0
        sig = jnp.zeros((0,), jnp.float32)

    # Folded per-node coefficient on Y (see header algebra).
    ycoef = (1.0 - alp * lam) - (alp * lam0) / denom
    if S > 0:
        ycoef = ycoef + (alp / float(K)) * jnp.sum(sig)

    # Per-graph scalar on each normalized-adjacency term.
    s = jnp.concatenate([jnp.full((1,), alp * lam, jnp.float32),
                         -(alp / float(K)) * sig])                      # [G]

    dinv0 = jax.lax.rsqrt(deg0)        # deg0^{-1/2}
    dinv1 = jax.lax.rsqrt(D1)          # D1^{-1/2}

    # Fold s_g * D^{-1/2} A_g D^{-1/2} into one bf16 adjacency stack so the
    # kernel is a pure MXU accumulation (half the HBM traffic of f32 A).
    A_list = [(s[0] * (dinv0 * jnp.asarray(A0, jnp.float32) * dinv0.T))
              .astype(jnp.bfloat16)]
    for i, Ai in enumerate(sub_As):
        A_list.append(
            (s[1 + i] * (dinv1 * jnp.asarray(Ai, jnp.float32) * dinv1.T))
            .astype(jnp.bfloat16))

    # Pad to lane/sublane friendly sizes (zeros are inert in the matmul;
    # ycoef rows beyond N are zero so padded output rows are just discarded).
    Np = _round_up(N, 128)
    Fp = _round_up(F, 128)
    TM = _pick_tile(Np)          # row tile of the output / A-dst
    TK = _pick_tile(Np)          # contraction tile (A-src)
    TF = _pick_tile(Fp)          # feature tile

    A_p = jnp.zeros((G, Np, Np), jnp.bfloat16).at[:, :N, :N].set(
        jnp.stack(A_list, axis=0))
    Yb_p = jnp.zeros((Np, Fp), jnp.bfloat16).at[:N, :F].set(
        Y.astype(jnp.bfloat16))                                   # matmul RHS
    Yf_p = jnp.zeros((Np, Fp), jnp.float32).at[:N, :F].set(Y)     # f32 epilogue
    c_p = jnp.zeros((Np, 1), jnp.float32).at[:N, :].set(ycoef)

    grid = (Np // TM, Fp // TF, G, Np // TK)

    out = pl.pallas_call(
        _propagate_kernel,
        out_shape=jax.ShapeDtypeStruct((Np, Fp), jnp.float32),
        grid_spec=pltpu.PrefetchScalarGridSpec(
            num_scalar_prefetch=0,
            grid=grid,
            in_specs=[
                pl.BlockSpec((1, TM, TK), lambda i, f, g, k: (g, i, k)),  # A'
                pl.BlockSpec((TK, TF), lambda i, f, g, k: (k, f)),        # Y bf16
                pl.BlockSpec((TM, TF), lambda i, f, g, k: (i, f)),        # Y f32
                pl.BlockSpec((TM, 1), lambda i, f, g, k: (i, 0)),         # ycoef
            ],
            out_specs=pl.BlockSpec((TM, TF), lambda i, f, g, k: (i, f)),  # resident acc
        ),
        compiler_params=pltpu.CompilerParams(
            # row/feature tiles are independent (v7x megacore); graph and
            # contraction axes are sequential reduction axes.
            dimension_semantics=("parallel", "parallel", "arbitrary", "arbitrary"),
            vmem_limit_bytes=48 * 1024 * 1024,
        ),
    )(A_p, Yb_p, Yf_p, c_p)

    return out[:N, :F]


def _reference(Y, A0, deg0, sub_As, D_list, alp, lam0, lam, lam_K, K):
    """Pure-JAX (f32) transcription of the PyTorch forward, for verification."""
    def norm_ax(A, X, d):
        dinv = jnp.power(d, -0.5)
        return (A @ (X * dinv)) * dinv

    D0 = D_list[0].reshape(-1, 1)
    if len(sub_As) > 0:
        D1 = jnp.sum(jnp.stack([d.reshape(-1, 1) for d in D_list[1:]], -1), -1)
        Yn = Y - alp * (lam0 * Y / (D0 + D1) +
                        lam * (Y - norm_ax(A0, Y, deg0.reshape(-1, 1))))
        for i, Ai in enumerate(sub_As):
            Yn = Yn + alp * jax.nn.sigmoid(lam_K[i]) * (1.0 / K) * (
                Y - norm_ax(Ai, Y, D1))
        return Yn
    return Y - alp * (lam0 * Y / D0 +
                      lam * (Y - norm_ax(A0, Y, deg0.reshape(-1, 1))))


if __name__ == "__main__":
    key = jax.random.PRNGKey(0)
    N, F, S = 20, 48, 3          # small, deliberately non-aligned (exercises padding)
    K = S

    keys = jax.random.split(key, 8)
    Y = jax.random.normal(keys[0], (N, F), jnp.float32)

    # dense weighted adjacencies (positive edge weights)
    A0 = jax.random.uniform(keys[1], (N, N), jnp.float32, 0.0, 1.0)
    sub_As = [jax.random.uniform(k, (N, N), jnp.float32, 0.0, 1.0)
              for k in jax.random.split(keys[2], S)]

    # degrees (strictly positive)
    deg0 = A0.sum(axis=1, keepdims=True) + 0.1                       # [N,1]
    D_list = [jax.random.uniform(k, (N, 1), jnp.float32, 0.5, 2.0)
              for k in jax.random.split(keys[3], S + 1)]

    # scalar hyper-parameters (deterministic)
    alp, lam0, lam = 0.1, 0.5, 0.8
    lam_K = [0.3, -0.2, 0.7]

    # --- g_list branch ---
    out = propagate(Y, A0, deg0, sub_As, D_list, alp, lam0, lam, lam_K, K)
    out = jax.block_until_ready(out)
    ref = _reference(Y, A0, deg0, sub_As, D_list, alp, lam0, lam,
                     jnp.array(lam_K, jnp.float32), K)
    # tolerance relaxed vs. f32-only version: adjacency / dot RHS are bf16
    # (f32 accumulation keeps the error ~1e-3 at these scales).
    assert jnp.allclose(out, ref, atol=1e-2, rtol=1e-2), "g_list branch mismatch"

    # --- else branch (plain graph, no subgraph list) ---
    out2 = propagate(Y, A0, deg0, [], [D_list[0]], alp, lam0, lam, [], 1)
    out2 = jax.block_until_ready(out2)
    ref2 = _reference(Y, A0, deg0, [], [D_list[0]], alp, lam0, lam,
                      jnp.zeros((0,), jnp.float32), 1)
    assert jnp.allclose(out2, ref2, atol=1e-2, rtol=1e-2), "else branch mismatch"

    print("KERNEL_OK")
</pallas_src>

<mosaic_0001>
module attributes {stable_mosaic.version = 11 : i64} {
  func.func @_propagate_kernel(%arg0: i32, %arg1: i32, %arg2: i32, %arg3: i32, %arg4: memref<1x128x128xbf16, #tpu.memory_space<vmem>>, %arg5: memref<128x128xbf16, #tpu.memory_space<vmem>>, %arg6: memref<128x128xf32, #tpu.memory_space<vmem>>, %arg7: memref<128x1xf32, #tpu.memory_space<vmem>>, %arg8: memref<128x128xf32, #tpu.memory_space<vmem>>) attributes {dimension_semantics = [#tpu.dimension_semantics<parallel>, #tpu.dimension_semantics<parallel>, #tpu.dimension_semantics<arbitrary>, #tpu.dimension_semantics<arbitrary>], iteration_bounds = array<i64: 1, 1, 4, 1>, scalar_prefetch = 0 : i64, scratch_operands = 0 : i64, tpu.core_type = #tpu.core_type<tc>, window_params = [{transform_indices = @transform_0, window_bounds = array<i64: 1, 128, 128>}, {transform_indices = @transform_1, window_bounds = array<i64: 128, 128>}, {transform_indices = @transform_2, window_bounds = array<i64: 128, 128>}, {transform_indices = @transform_3, window_bounds = array<i64: 128, 1>}, {transform_indices = @transform_4, window_bounds = array<i64: 128, 128>}]} {
    %c0_i32 = arith.constant 0 : i32
    %0 = arith.cmpi eq, %arg2, %c0_i32 : i32
    %c0_i32_0 = arith.constant 0 : i32
    %1 = arith.cmpi eq, %arg3, %c0_i32_0 : i32
    %2 = arith.andi %0, %1 : i1
    %3 = arith.extui %2 : i1 to i32
    %c0_i32_1 = arith.constant 0 : i32
    %4 = arith.cmpi ne, %3, %c0_i32_1 : i32
    scf.if %4 {
      %c0_10 = arith.constant 0 : index
      %c0_11 = arith.constant 0 : index
      %12 = vector.load %arg7[%c0_10, %c0_11] : memref<128x1xf32, #tpu.memory_space<vmem>>, vector<128x1xf32>
      %c0_12 = arith.constant 0 : index
      %c0_13 = arith.constant 0 : index
      %13 = vector.load %arg6[%c0_12, %c0_13] : memref<128x128xf32, #tpu.memory_space<vmem>>, vector<128x128xf32>
      %14 = vector.broadcast %12 : vector<128x1xf32> to vector<128x128xf32>
      %15 = arith.mulf %14, %13 : vector<128x128xf32>
      %c0_14 = arith.constant 0 : index
      %c0_15 = arith.constant 0 : index
      %16 = vector.load %arg8[%c0_14, %c0_15] : memref<128x128xf32, #tpu.memory_space<vmem>>, vector<128x128xf32>
      tpu.vector_store %arg8[%c0_14, %c0_15], %15 {strides = array<i32>} : memref<128x128xf32, #tpu.memory_space<vmem>>, vector<128x128xf32>,
    } else {
    }
    %c0 = arith.constant 0 : index
    %c0_2 = arith.constant 0 : index
    %5 = vector.load %arg8[%c0, %c0_2] : memref<128x128xf32, #tpu.memory_space<vmem>>, vector<128x128xf32>
    %c0_3 = arith.constant 0 : index
    %c0_4 = arith.constant 0 : index
    %c0_5 = arith.constant 0 : index
    %6 = vector.load %arg4[%c0_3, %c0_4, %c0_5] : memref<1x128x128xbf16, #tpu.memory_space<vmem>>, vector<1x128x128xbf16>
    %7 = vector.shape_cast %6 : vector<1x128x128xbf16> to vector<128x128xbf16>
    %c0_6 = arith.constant 0 : index
    %c0_7 = arith.constant 0 : index
    %8 = vector.load %arg5[%c0_6, %c0_7] : memref<128x128xbf16, #tpu.memory_space<vmem>>, vector<128x128xbf16>
    %cst = arith.constant dense<0.000000e+00> : vector<128x128xf32>
    %9 = tpu.matmul %7, %8, %cst {dimension_numbers = #tpu.dot_dimension_numbers<[1], [0], [0], [1], [0, 0, 1, 1], [], []>} : vector<128x128xbf16>, vector<128x128xbf16>, vector<128x128xf32> -> vector<128x128xf32>
    %10 = arith.addf %5, %9 : vector<128x128xf32>
    %c0_8 = arith.constant 0 : index
    %c0_9 = arith.constant 0 : index
    %11 = vector.load %arg8[%c0_8, %c0_9] : memref<128x128xf32, #tpu.memory_space<vmem>>, vector<128x128xf32>
    tpu.vector_store %arg8[%c0_8, %c0_9], %10 {strides = array<i32>} : memref<128x128xf32, #tpu.memory_space<vmem>>, vector<128x128xf32>,
    return
  }
  func.func @transform_0(%arg0: i32, %arg1: i32, %arg2: i32, %arg3: i32) -> (i32, i32, i32) {
    %c0_i32 = arith.constant 0 : i32
    return %arg2, %arg0, %arg3 : i32, i32, i32
  }
  func.func @transform_1(%arg0: i32, %arg1: i32, %arg2: i32, %arg3: i32) -> (i32, i32) {
    %c0_i32 = arith.constant 0 : i32
    return %arg3, %arg1 : i32, i32
  }
  func.func @transform_2(%arg0: i32, %arg1: i32, %arg2: i32, %arg3: i32) -> (i32, i32) {
    %c0_i32 = arith.constant 0 : i32
    return %arg0, %arg1 : i32, i32
  }
  func.func @transform_3(%arg0: i32, %arg1: i32, %arg2: i32, %arg3: i32) -> (i32, i32) {
    %c0_i32 = arith.constant 0 : i32
    %c0_i32_0 = arith.constant 0 : i32
    return %arg0, %c0_i32 : i32, i32
  }
  func.func @transform_4(%arg0: i32, %arg1: i32, %arg2: i32, %arg3: i32) -> (i32, i32) {
    %c0_i32 = arith.constant 0 : i32
    return %arg0, %arg1 : i32, i32
  }
}

</mosaic_0001>

<llo_original>
// kernel: tpu_custom_call.1
$region0: #{tpu_custom_call.1}
  #allocation0 [shape = 'u32[]', space=smem, size = 0x4, offset = 0x4, fixed_abs, tag = 'smem constant byte address 0x4 - core index']
  #allocation1 [shape = 'u32[144,128]{1,0:T(1,128)}', space=vmem, size = 0x12000, scoped, tag = 'internal scratch']
  %s0 = inlined_call_operand.hbm [shape: bf16[4,128,128], index: 0, kind: input, shape index: {}]
  %s1 = inlined_call_operand.hbm [shape: bf16[128,128], index: 1, kind: input, shape index: {}]
  %s2 = inlined_call_operand.vmem [shape: f32[128,128], index: 2, kind: input, shape index: {}]
  %s3 = inlined_call_operand.vmem [shape: f32[128,1], index: 3, kind: input, shape index: {}]
  %s4 = inlined_call_operand.hbm [shape: f32[128,128], index: 4, kind: output, shape index: {}]
  %s5 = sld [smem:[#allocation0]]
  $region61: #{tpu_custom_call.1} parent=0
    _
  %s7 = ssub.s32 1, %s5
  %s8 = scalar_select 0, %s7, %s5
  $region1: #{tpu_custom_call.1} parent=0
    #allocation2 [shape = 'u8[65536]{0}', space=vmem, size = 0x10000, scoped, tag = 'input window, operand 0']
    #allocation3 [shape = 's32[2]{0}', space=sflag, size = 0x8, scoped, tag = 'scoped memory for tpu_custom_call.1']
    #allocation4 [shape = 's32[2]{0}', space=sflag, size = 0x8, scoped, tag = 'scoped memory for tpu_custom_call.1']
    #allocation5 [shape = 'u8[32768]{0}', space=vmem, size = 0x8000, scoped, tag = 'input window, operand 1, single buffered']
    #allocation6 [shape = 's32[1]{0}', space=sflag, size = 0x4, scoped, tag = 'scoped memory for tpu_custom_call.1']
    #allocation7 [shape = 'u8[65536]{0}', space=vmem, size = 0x10000, scoped, tag = 'output window, operand 0, single buffered']
    %9 = vsyncpa [#allocation3], 0
    %s10 = scalar_lea.sflag [#allocation3], 1
    %11 = vsyncpa %s10, 0
    %12 = vsyncpa [#allocation6], 0
    %13 = vsyncpa [#allocation4], 0
    loop: start=0, step=1, limit=6
    $region2: #{tpu_custom_call.1} parent=1 // loop_pre_header
      _
    $region3: #{tpu_custom_call.1} parent=1 // loop_header
      %s15 = sphi 0, %s19
      %p16 = scmp.ge.s32.totalorder %s15, 6
      %s22 = sphi 0, %s48
      %s23 = sphi 0, %s44
      %s24 = sphi 0, %s40
      %s25 = sphi 0, %s36
      %s26 = sphi 0, %s22
      %s27 = sphi 0, %s23
      %s28 = sphi 0, %s24
      %s29 = sphi 0, %s25
      %s30 = sphi 0, %s26
      %s31 = sphi 0, %s27
      %s32 = sphi 0, %s28
      %s33 = sphi 0, %s29
      %s55 = sphi 0, %s57
      %s58 = sphi 0, %s55
      %s59 = sphi 0, %s58
      %s75 = sphi 0, %s59
      %s83 = sphi 0, %s85
      %s86 = sphi 0, %s83
      %s87 = sphi 0, %s86
      %s103 = sphi 0, %s87
      %s111 = sphi 0, %s113
      %s114 = sphi 0, %s111
      %s115 = sphi 0, %s114
      %s131 = sphi 0, %s115
      %s137 = sphi 0, %s139
      %s140 = sphi 0, %s137
      %s141 = sphi 0, %s140
      %s157 = sphi 0, %s141
      %s165 = sphi 0, %s167
      %s168 = sphi 0, %s165
      %s169 = sphi 0, %s168
      %s185 = sphi 0, %s169
    $region4: #{tpu_custom_call.1} parent=1 // loop_header_branch
      %18 = sbr.rel (%p16) target = $region8
    $region5: #{tpu_custom_call.1} parent=1 // loop_body
      %s20 = ssub.s32 %s15, 1
      %s21 = ssub.s32 %s15, 2
      %s34 = sadd.s32 1, %s25
      %p35 = scmp.ge.s32.totalorder %s34, 1
      %s36 = scalar_select %p35, 0, %s34
      %s37 = sadd.s32 1, %s24
      %s38 = scalar_select %p35, %s37, %s24
      %p39 = scmp.ge.s32.totalorder %s38, 4
      %s40 = scalar_select %p39, 0, %s38
      %s41 = sadd.s32 1, %s23
      %s42 = scalar_select %p39, %s41, %s23
      %p43 = scmp.ge.s32.totalorder %s42, 1
      %s44 = scalar_select %p43, 0, %s42
      %s45 = sadd.s32 1, %s22
      %s46 = scalar_select %p43, %s45, %s22
      %p47 = scmp.ge.s32.totalorder %s46, 1
      %s48 = scalar_select %p47, 0, %s46
      %s49 = ssub.s32 %s24, %s40
      %s50 = ssub.s32 %s22, %s48
      %s51 = sor.u32 %s49, %s50
      %s52 = ssub.s32 %s25, %s36
      %s53 = sor.u32 %s51, %s52
      %p54 = scmp.eq.s32.totalorder %s53, 0
      %s56 = sadd.s32 %s55, 1
      %s57 = scalar_select %p54, %s55, %s56
      %p60 = pneg %p54
      %p61 = scmp.eq.s32.totalorder %s15, 3
      %p62 = por %p60, %p61
      %p63 = scmp.ne.s32.totalorder %s55, %s58
      %p64 = scmp.eq.s32.totalorder %s15, 0
      %p65 = por %p63, %p64
      %p66 = scmp.ne.s32.totalorder %s55, %s58
      %p67 = scmp.eq.s32.totalorder %s20, 3
      %p68 = por %p66, %p67
      %p69 = scmp.ne.s32.totalorder %s58, %s59
      %p70 = scmp.eq.s32.totalorder %s20, 0
      %p71 = por %p69, %p70
      %p72 = scmp.ne.s32.totalorder %s58, %s59
      %p73 = scmp.eq.s32.totalorder %s21, 3
      %p74 = por %p72, %p73
      %p76 = scmp.ne.s32.totalorder %s59, %s75
      %p77 = scmp.eq.s32.totalorder %s21, 0
      %p78 = por %p76, %p77
      %s79 = ssub.s32 %s25, %s36
      %s80 = ssub.s32 %s23, %s44
      %s81 = sor.u32 %s79, %s80
      %p82 = scmp.eq.s32.totalorder %s81, 0
      %s84 = sadd.s32 %s83, 1
      %s85 = scalar_select %p82, %s83, %s84
      %p88 = pneg %p82
      %p89 = scmp.eq.s32.totalorder %s15, 3
      %p90 = por %p88, %p89
      %p91 = scmp.ne.s32.totalorder %s83, %s86
      %p92 = scmp.eq.s32.totalorder %s15, 0
      %p93 = por %p91, %p92
      %p94 = scmp.ne.s32.totalorder %s83, %s86
      %p95 = scmp.eq.s32.totalorder %s20, 3
      %p96 = por %p94, %p95
      %p97 = scmp.ne.s32.totalorder %s86, %s87
      %p98 = scmp.eq.s32.totalorder %s20, 0
      %p99 = por %p97, %p98
      %p100 = scmp.ne.s32.totalorder %s86, %s87
      %p101 = scmp.eq.s32.totalorder %s21, 3
      %p102 = por %p100, %p101
      %p104 = scmp.ne.s32.totalorder %s87, %s103
      %p105 = scmp.eq.s32.totalorder %s21, 0
      %p106 = por %p104, %p105
      %s107 = ssub.s32 %s22, %s48
      %s108 = ssub.s32 %s23, %s44
      %s109 = sor.u32 %s107, %s108
      %p110 = scmp.eq.s32.totalorder %s109, 0
      %s112 = sadd.s32 %s111, 1
      %s113 = scalar_select %p110, %s111, %s112
      %p116 = pneg %p110
      %p117 = scmp.eq.s32.totalorder %s15, 3
      %p118 = por %p116, %p117
      %p119 = scmp.ne.s32.totalorder %s111, %s114
      %p120 = scmp.eq.s32.totalorder %s15, 0
      %p121 = por %p119, %p120
      %p122 = scmp.ne.s32.totalorder %s111, %s114
      %p123 = scmp.eq.s32.totalorder %s20, 3
      %p124 = por %p122, %p123
      %p125 = scmp.ne.s32.totalorder %s114, %s115
      %p126 = scmp.eq.s32.totalorder %s20, 0
      %p127 = por %p125, %p126
      %p128 = scmp.ne.s32.totalorder %s114, %s115
      %p129 = scmp.eq.s32.totalorder %s21, 3
      %p130 = por %p128, %p129
      %p132 = scmp.ne.s32.totalorder %s115, %s131
      %p133 = scmp.eq.s32.totalorder %s21, 0
      %p134 = por %p132, %p133
      %s135 = ssub.s32 %s22, %s48
      %p136 = scmp.eq.s32.totalorder %s135, 0
      %s138 = sadd.s32 %s137, 1
      %s139 = scalar_select %p136, %s137, %s138
      %p142 = pneg %p136
      %p143 = scmp.eq.s32.totalorder %s15, 3
      %p144 = por %p142, %p143
      %p145 = scmp.ne.s32.totalorder %s137, %s140
      %p146 = scmp.eq.s32.totalorder %s15, 0
      %p147 = por %p145, %p146
      %p148 = scmp.ne.s32.totalorder %s137, %s140
      %p149 = scmp.eq.s32.totalorder %s20, 3
      %p150 = por %p148, %p149
      %p151 = scmp.ne.s32.totalorder %s140, %s141
      %p152 = scmp.eq.s32.totalorder %s20, 0
      %p153 = por %p151, %p152
      %p154 = scmp.ne.s32.totalorder %s140, %s141
      %p155 = scmp.eq.s32.totalorder %s21, 3
      %p156 = por %p154, %p155
      %p158 = scmp.ne.s32.totalorder %s141, %s157
      %p159 = scmp.eq.s32.totalorder %s21, 0
      %p160 = por %p158, %p159
      %s161 = ssub.s32 %s22, %s48
      %s162 = ssub.s32 %s23, %s44
      %s163 = sor.u32 %s161, %s162
      %p164 = scmp.eq.s32.totalorder %s163, 0
      %s166 = sadd.s32 %s165, 1
      %s167 = scalar_select %p164, %s165, %s166
      %p170 = pneg %p164
      %p171 = scmp.eq.s32.totalorder %s15, 3
      %p172 = por %p170, %p171
      %p173 = scmp.ne.s32.totalorder %s165, %s168
      %p174 = scmp.eq.s32.totalorder %s15, 0
      %p175 = por %p173, %p174
      %p176 = scmp.ne.s32.totalorder %s165, %s168
      %p177 = scmp.eq.s32.totalorder %s20, 3
      %p178 = por %p176, %p177
      %p179 = scmp.ne.s32.totalorder %s168, %s169
      %p180 = scmp.eq.s32.totalorder %s20, 0
      %p181 = por %p179, %p180
      %p182 = scmp.ne.s32.totalorder %s168, %s169
      %p183 = scmp.eq.s32.totalorder %s21, 3
      %p184 = por %p182, %p183
      %p186 = scmp.ne.s32.totalorder %s169, %s185
      %p187 = scmp.eq.s32.totalorder %s21, 0
      %p188 = por %p186, %p187
      %p189 = scmp.le.s32.totalorder 1, %s15
      %p190 = scmp.lt.s32.totalorder %s15, 5
      %p191 = pnand %p189, %p190
      %p192 = pneg %p191
      // Predicated region
      $region9: #{tpu_custom_call.1} parent=5 // pred_check
        _
      $region10: #{tpu_custom_call.1} parent=5 // pred_check_branch
        %194 = sbr.rel (%p191) target = $region12
      $region11: #{tpu_custom_call.1} parent=5 // pred_region
        %s195 = ssub.s32 %s15, 1
        // Predicated region
        $region13: #{tpu_custom_call.1} parent=11 // pred_check
          %p196 = pneg %p99
        $region14: #{tpu_custom_call.1} parent=11 // pred_check_branch
          %198 = sbr.rel (%p196) target = $region16
        $region15: #{tpu_custom_call.1} parent=11 // pred_region
          %s199 = smul.u32 16, %s29
          %s201 = ssub.s32 1024, 1024
          %202 = vsyncadd [#allocation6], %s201
          %s203 = sadd.s32 %s27, %s199
          %s204 = smul.addr %s203, 64
          %s205 = scalar_lea.hbm %s1, %s204
          %s206 = sshll.u32 [#allocation5], 4
          %s207 = int_to_ptr.vmem [resolvable:$true] %s206
          %212 = dma.hbm_to_vmem [thread:$0]  %s205, 1024, %s207, [#allocation6], 64, 64, 4
        $region16: #{tpu_custom_call.1} parent=11 // pred_fallthru
          _
        // Predicated region
        $region17: #{tpu_custom_call.1} parent=11 // pred_check
          %p213 = pneg %p127
        $region18: #{tpu_custom_call.1} parent=11 // pred_check_branch
          %215 = sbr.rel (%p213) target = $region20
        $region19: #{tpu_custom_call.1} parent=11 // pred_region
          %s216 = smul.u32 16, %s26
          %p217 = scmp.lt.s32.totalorder %s216, 15
          %s218 = scalar_select %p217, %s216, 15
          %p219 = scmp.lt.s32.totalorder %s27, 0
          %s220 = scalar_select %p219, %s27, 0
          %s221 = sadd.s32 %s220, %s218
          %s222 = smul.addr %s221, 8
          %s223 = scalar_lea.vmem %s2, %s222
          %s224 = smul.u32 16, %s26
        $region20: #{tpu_custom_call.1} parent=11 // pred_fallthru
          _
        // Predicated region
        $region21: #{tpu_custom_call.1} parent=11 // pred_check
          %p225 = pneg %p153
        $region22: #{tpu_custom_call.1} parent=11 // pred_check_branch
          %227 = sbr.rel (%p225) target = $region24
        $region23: #{tpu_custom_call.1} parent=11 // pred_region
          %s228 = smul.u32 16, %s26
          %p229 = scmp.lt.s32.totalorder %s228, 15
          %s230 = scalar_select %p229, %s228, 15
          %s231 = smul.addr %s230, 8
          %s232 = scalar_lea.vmem %s3, %s231
          %s233 = smul.u32 16, %s26
        $region24: #{tpu_custom_call.1} parent=11 // pred_fallthru
          _
      $region12: #{tpu_custom_call.1} parent=5 // pred_fallthru
        _
      %p234 = scmp.lt.s32.totalorder %s15, 4
      // Predicated region
      $region25: #{tpu_custom_call.1} parent=5 // pred_check
        %p235 = pneg %p234
      $region26: #{tpu_custom_call.1} parent=5 // pred_check_branch
        %237 = sbr.rel (%p235) target = $region28
      $region27: #{tpu_custom_call.1} parent=5 // pred_region
        // Predicated region
        $region29: #{tpu_custom_call.1} parent=27 // pred_check
          %p238 = pneg %p65
        $region30: #{tpu_custom_call.1} parent=27 // pred_check_branch
          %240 = sbr.rel (%p238) target = $region32
        $region31: #{tpu_custom_call.1} parent=27 // pred_region
          %s241 = sand.u32 %s55, 1
          %s242 = scalar_lea.sflag [#allocation3], %s241
          %s243 = sand.u32 %s55, 1
          %s244 = smul.addr %s243, 64
          %s245 = scalar_lea.vmem [#allocation2], %s244
          %s246 = smul.u32 16, %s22
          %s248 = ssub.s32 1024, 1024
          %249 = vsyncadd %s242, %s248
          %s250 = sadd.s32 %s25, %s246
          %s251 = smul.addr %s24, 16
          %s252 = sadd.s32 %s250, %s251
          %s253 = smul.addr %s252, 64
          %s254 = scalar_lea.hbm %s0, %s253
          %s255 = sshll.u32 %s245, 4
          %s256 = int_to_ptr.vmem [resolvable:$true] %s255
          %261 = dma.hbm_to_vmem [thread:$0]  %s254, 1024, %s256, %s242, 64, 64, 4
        $region32: #{tpu_custom_call.1} parent=27 // pred_fallthru
          _
      $region28: #{tpu_custom_call.1} parent=5 // pred_fallthru
        _
      %p262 = scmp.le.s32.totalorder 1, %s15
      %p263 = scmp.lt.s32.totalorder %s15, 5
      %p264 = pnand %p262, %p263
      %p265 = pneg %p264
      // Predicated region
      $region33: #{tpu_custom_call.1} parent=5 // pred_check
        _
      $region34: #{tpu_custom_call.1} parent=5 // pred_check_branch
        %267 = sbr.rel (%p264) target = $region36
      $region35: #{tpu_custom_call.1} parent=5 // pred_region
        %s268 = ssub.s32 %s15, 1
        %s269 = sand.u32 %s58, 1
        %s270 = scalar_lea.sflag [#allocation3], %s269
        %s271 = sand.u32 %s58, 1
        %s272 = smul.addr %s271, 64
        %s273 = scalar_lea.vmem [#allocation2], %s272
        // Predicated region
        $region37: #{tpu_custom_call.1} parent=35 // pred_check
          %p274 = pneg %p71
        $region38: #{tpu_custom_call.1} parent=35 // pred_check_branch
          %276 = sbr.rel (%p274) target = $region40
        $region39: #{tpu_custom_call.1} parent=35 // pred_region
          %277 = dma.done %s270, 1024
        $region40: #{tpu_custom_call.1} parent=35 // pred_fallthru
          _
        // Predicated region
        $region41: #{tpu_custom_call.1} parent=35 // pred_check
          %p278 = pneg %p99
        $region42: #{tpu_custom_call.1} parent=35 // pred_check_branch
          %280 = sbr.rel (%p278) target = $region44
        $region43: #{tpu_custom_call.1} parent=35 // pred_region
          %281 = dma.done [#allocation6], 1024
        $region44: #{tpu_custom_call.1} parent=35 // pred_fallthru
          _
        %s282 = sand.u32 %s58, 1
        %s283 = scalar_lea.sflag [#allocation3], %s282
        %s284 = sand.u32 %s58, 1
        %s285 = smul.addr %s284, 64
        %s286 = scalar_lea.vmem [#allocation2], %s285
        %p287 = pneg %p71
        %p288 = pneg %p68
        %p289 = pneg %p99
        %p290 = pneg %p96
        %s291 = smul.u32 16, %s26
        %p292 = scmp.lt.s32.totalorder %s291, 15
        %s293 = scalar_select %p292, %s291, 15
        %p294 = scmp.lt.s32.totalorder %s27, 0
        %s295 = scalar_select %p294, %s27, 0
        %s296 = sadd.s32 %s295, %s293
        %s297 = smul.addr %s296, 8
        %s298 = scalar_lea.vmem %s2, %s297
        %p299 = pneg %p127
        %p300 = pneg %p124
        %s301 = smul.u32 16, %s26
        %p302 = scmp.lt.s32.totalorder %s301, 15
        %s303 = scalar_select %p302, %s301, 15
        %s304 = smul.addr %s303, 8
        %s305 = scalar_lea.vmem %s3, %s304
        %p306 = pneg %p153
        %p307 = pneg %p150
        %p308 = pneg %p181
        %p309 = pneg %p178
        %s310 = smul.u32 16, %s26
        %s311 = smul.u32 16, %s29
        %s312 = smul.u32 16, %s26
        %p313 = scmp.lt.s32.totalorder %s312, 15
        %s314 = scalar_select %p313, %s312, 15
        %p315 = scmp.lt.s32.totalorder %s27, 0
        %s316 = scalar_select %p315, %s27, 0
        %s317 = sadd.s32 %s316, %s314
        %s318 = smul.addr %s317, 8
        %s319 = scalar_lea.vmem %s2, %s318
        %s320 = smul.u32 16, %s26
        %s321 = smul.u32 16, %s26
        %p322 = scmp.lt.s32.totalorder %s321, 15
        %s323 = scalar_select %p322, %s321, 15
        %s324 = smul.addr %s323, 8
        %s325 = scalar_lea.vmem %s3, %s324
        %s326 = smul.u32 16, %s26
        %s327 = smul.u32 16, %s26
        %p329 = scmp.eq.s32.totalorder %s28, 0
        %p330 = scmp.eq.s32.totalorder %s29, 0
        %p331 = pnand %p329, %p330
        %p332 = pneg %p331
        // Predicated region
        $region45: #{tpu_custom_call.1} parent=35 // pred_check
          _
        $region46: #{tpu_custom_call.1} parent=35 // pred_check_branch
          %334 = sbr.rel (%p331) target = $region48
        $region47: #{tpu_custom_call.1} parent=35 // pred_region
          %v335 = vld [vmem:[%s325] sm:$0xff]
          %v336 = vld [vmem:[%s325 + $0x8] sm:$0xff]
          %v337 = vld [vmem:[%s325 + $0x10] sm:$0xff]
          %v338 = vld [vmem:[%s325 + $0x18] sm:$0xff]
          %v339 = vld [vmem:[%s325 + $0x20] sm:$0xff]
          %v340 = vld [vmem:[%s325 + $0x28] sm:$0xff]
          %v341 = vld [vmem:[%s325 + $0x30] sm:$0xff]
          %v342 = vld [vmem:[%s325 + $0x38] sm:$0xff]
          %v343 = vld [vmem:[%s325 + $0x40] sm:$0xff]
          %v344 = vld [vmem:[%s325 + $0x48] sm:$0xff]
          %v345 = vld [vmem:[%s325 + $0x50] sm:$0xff]
          %v346 = vld [vmem:[%s325 + $0x58] sm:$0xff]
          %v347 = vld [vmem:[%s325 + $0x60] sm:$0xff]
          %v348 = vld [vmem:[%s325 + $0x68] sm:$0xff]
          %v349 = vld [vmem:[%s325 + $0x70] sm:$0xff]
          %v350 = vld [vmem:[%s325 + $0x78] sm:$0xff]
          %v351 = vld [vmem:[%s319] sm:$0xff]
          %v352 = vld [vmem:[%s319 + $0x8] sm:$0xff]
          %v353 = vld [vmem:[%s319 + $0x10] sm:$0xff]
          %v354 = vld [vmem:[%s319 + $0x18] sm:$0xff]
          %v355 = vld [vmem:[%s319 + $0x20] sm:$0xff]
          %v356 = vld [vmem:[%s319 + $0x28] sm:$0xff]
          %v357 = vld [vmem:[%s319 + $0x30] sm:$0xff]
          %v358 = vld [vmem:[%s319 + $0x38] sm:$0xff]
          %v359 = vld [vmem:[%s319 + $0x40] sm:$0xff]
          %v360 = vld [vmem:[%s319 + $0x48] sm:$0xff]
          %v361 = vld [vmem:[%s319 + $0x50] sm:$0xff]
          %v362 = vld [vmem:[%s319 + $0x58] sm:$0xff]
          %v363 = vld [vmem:[%s319 + $0x60] sm:$0xff]
          %v364 = vld [vmem:[%s319 + $0x68] sm:$0xff]
          %v365 = vld [vmem:[%s319 + $0x70] sm:$0xff]
          %v366 = vld [vmem:[%s319 + $0x78] sm:$0xff]
          %368 = vset.pattern.permute.xlu0 0
          %369 = vperm.xlu0 %368, %v335
          %v370 = vpop.permute.xlu0 %369
          %373 = vset.pattern.permute.xlu0 0
          %374 = vperm.xlu0 %373, %v336
          %v375 = vpop.permute.xlu0 %374
          %378 = vset.pattern.permute.xlu0 0
          %379 = vperm.xlu0 %378, %v337
          %v380 = vpop.permute.xlu0 %379
          %383 = vset.pattern.permute.xlu0 0
          %384 = vperm.xlu0 %383, %v338
          %v385 = vpop.permute.xlu0 %384
          %388 = vset.pattern.permute.xlu0 0
          %389 = vperm.xlu0 %388, %v339
          %v390 = vpop.permute.xlu0 %389
          %393 = vset.pattern.permute.xlu0 0
          %394 = vperm.xlu0 %393, %v340
          %v395 = vpop.permute.xlu0 %394
          %398 = vset.pattern.permute.xlu0 0
          %399 = vperm.xlu0 %398, %v341
          %v400 = vpop.permute.xlu0 %399
          %403 = vset.pattern.permute.xlu0 0
          %404 = vperm.xlu0 %403, %v342
          %v405 = vpop.permute.xlu0 %404
          %408 = vset.pattern.permute.xlu0 0
          %409 = vperm.xlu0 %408, %v343
          %v410 = vpop.permute.xlu0 %409
          %413 = vset.pattern.permute.xlu0 0
          %414 = vperm.xlu0 %413, %v344
          %v415 = vpop.permute.xlu0 %414
          %418 = vset.pattern.permute.xlu0 0
          %419 = vperm.xlu0 %418, %v345
          %v420 = vpop.permute.xlu0 %419
          %423 = vset.pattern.permute.xlu0 0
          %424 = vperm.xlu0 %423, %v346
          %v425 = vpop.permute.xlu0 %424
          %428 = vset.pattern.permute.xlu0 0
          %429 = vperm.xlu0 %428, %v347
          %v430 = vpop.permute.xlu0 %429
          %433 = vset.pattern.permute.xlu0 0
          %434 = vperm.xlu0 %433, %v348
          %v435 = vpop.permute.xlu0 %434
          %438 = vset.pattern.permute.xlu0 0
          %439 = vperm.xlu0 %438, %v349
          %v440 = vpop.permute.xlu0 %439
          %443 = vset.pattern.permute.xlu0 0
          %444 = vperm.xlu0 %443, %v350
          %v445 = vpop.permute.xlu0 %444
          %v447 = vmul.f32 %v370, %v351
          %v448 = vmul.f32 %v375, %v352
          %v449 = vmul.f32 %v380, %v353
          %v450 = vmul.f32 %v385, %v354
          %v451 = vmul.f32 %v390, %v355
          %v452 = vmul.f32 %v395, %v356
          %v453 = vmul.f32 %v400, %v357
          %v454 = vmul.f32 %v405, %v358
          %v455 = vmul.f32 %v410, %v359
          %v456 = vmul.f32 %v415, %v360
          %v457 = vmul.f32 %v420, %v361
          %v458 = vmul.f32 %v425, %v362
          %v459 = vmul.f32 %v430, %v363
          %v460 = vmul.f32 %v435, %v364
          %v461 = vmul.f32 %v440, %v365
          %v462 = vmul.f32 %v445, %v366
          %463 = vst [vmem:[#allocation7] sm:$0xff] %v447
          %464 = vst [vmem:[#allocation7 + $0x8] sm:$0xff] %v448
          %465 = vst [vmem:[#allocation7 + $0x10] sm:$0xff] %v449
          %466 = vst [vmem:[#allocation7 + $0x18] sm:$0xff] %v450
          %467 = vst [vmem:[#allocation7 + $0x20] sm:$0xff] %v451
          %468 = vst [vmem:[#allocation7 + $0x28] sm:$0xff] %v452
          %469 = vst [vmem:[#allocation7 + $0x30] sm:$0xff] %v453
          %470 = vst [vmem:[#allocation7 + $0x38] sm:$0xff] %v454
          %471 = vst [vmem:[#allocation7 + $0x40] sm:$0xff] %v455
          %472 = vst [vmem:[#allocation7 + $0x48] sm:$0xff] %v456
          %473 = vst [vmem:[#allocation7 + $0x50] sm:$0xff] %v457
          %474 = vst [vmem:[#allocation7 + $0x58] sm:$0xff] %v458
          %475 = vst [vmem:[#allocation7 + $0x60] sm:$0xff] %v459
          %476 = vst [vmem:[#allocation7 + $0x68] sm:$0xff] %v460
          %477 = vst [vmem:[#allocation7 + $0x70] sm:$0xff] %v461
          %478 = vst [vmem:[#allocation7 + $0x78] sm:$0xff] %v462
        $region48: #{tpu_custom_call.1} parent=35 // pred_fallthru
          _
        %v479 = vld [vmem:[#allocation7] sm:$0xff]
        %v480 = vld [vmem:[#allocation7 + $0x8] sm:$0xff]
        %v481 = vld [vmem:[#allocation7 + $0x10] sm:$0xff]
        %v482 = vld [vmem:[#allocation7 + $0x18] sm:$0xff]
        %v483 = vld [vmem:[#allocation7 + $0x20] sm:$0xff]
        %v484 = vld [vmem:[#allocation7 + $0x28] sm:$0xff]
        %v485 = vld [vmem:[#allocation7 + $0x30] sm:$0xff]
        %v486 = vld [vmem:[#allocation7 + $0x38] sm:$0xff]
        %v487 = vld [vmem:[#allocation7 + $0x40] sm:$0xff]
        %v488 = vld [vmem:[#allocation7 + $0x48] sm:$0xff]
        %v489 = vld [vmem:[#allocation7 + $0x50] sm:$0xff]
        %v490 = vld [vmem:[#allocation7 + $0x58] sm:$0xff]
        %v491 = vld [vmem:[#allocation7 + $0x60] sm:$0xff]
        %v492 = vld [vmem:[#allocation7 + $0x68] sm:$0xff]
        %v493 = vld [vmem:[#allocation7 + $0x70] sm:$0xff]
        %v494 = vld [vmem:[#allocation7 + $0x78] sm:$0xff]
        %v495 = vld [vmem:[%s273] sm:$0xf]
        %v496 = vld [vmem:[%s273 + $0x4] sm:$0xf]
        %v497 = vld [vmem:[%s273 + $0x8] sm:$0xf]
        %v498 = vld [vmem:[%s273 + $0xc] sm:$0xf]
        %v499 = vld [vmem:[%s273 + $0x10] sm:$0xf]
        %v500 = vld [vmem:[%s273 + $0x14] sm:$0xf]
        %v501 = vld [vmem:[%s273 + $0x18] sm:$0xf]
        %v502 = vld [vmem:[%s273 + $0x1c] sm:$0xf]
        %v503 = vld [vmem:[%s273 + $0x20] sm:$0xf]
        %v504 = vld [vmem:[%s273 + $0x24] sm:$0xf]
        %v505 = vld [vmem:[%s273 + $0x28] sm:$0xf]
        %v506 = vld [vmem:[%s273 + $0x2c] sm:$0xf]
        %v507 = vld [vmem:[%s273 + $0x30] sm:$0xf]
        %v508 = vld [vmem:[%s273 + $0x34] sm:$0xf]
        %v509 = vld [vmem:[%s273 + $0x38] sm:$0xf]
        %v510 = vld [vmem:[%s273 + $0x3c] sm:$0xf]
        %v511 = vld [vmem:[#allocation5] sm:$0xf]
        %v512 = vld [vmem:[#allocation5 + $0x4] sm:$0xf]
        %v513 = vld [vmem:[#allocation5 + $0x8] sm:$0xf]
        %v514 = vld [vmem:[#allocation5 + $0xc] sm:$0xf]
        %v515 = vld [vmem:[#allocation5 + $0x10] sm:$0xf]
        %v516 = vld [vmem:[#allocation5 + $0x14] sm:$0xf]
        %v517 = vld [vmem:[#allocation5 + $0x18] sm:$0xf]
        %v518 = vld [vmem:[#allocation5 + $0x1c] sm:$0xf]
        %v519 = vld [vmem:[#allocation5 + $0x20] sm:$0xf]
        %v520 = vld [vmem:[#allocation5 + $0x24] sm:$0xf]
        %v521 = vld [vmem:[#allocation5 + $0x28] sm:$0xf]
        %v522 = vld [vmem:[#allocation5 + $0x2c] sm:$0xf]
        %v523 = vld [vmem:[#allocation5 + $0x30] sm:$0xf]
        %v524 = vld [vmem:[#allocation5 + $0x34] sm:$0xf]
        %v525 = vld [vmem:[#allocation5 + $0x38] sm:$0xf]
        %v526 = vld [vmem:[#allocation5 + $0x3c] sm:$0xf]
        %v543 = vunpack.c.l.b16 %v495
        %v544 = vunpack.c.l.b16 %v496
        %v545 = vunpack.c.l.b16 %v497
        %v546 = vunpack.c.l.b16 %v498
        %v547 = vunpack.c.l.b16 %v499
        %v548 = vunpack.c.l.b16 %v500
        %v549 = vunpack.c.l.b16 %v501
        %v550 = vunpack.c.l.b16 %v502
        %v551 = vunpack.c.l.b16 %v503
        %v552 = vunpack.c.l.b16 %v504
        %v553 = vunpack.c.l.b16 %v505
        %v554 = vunpack.c.l.b16 %v506
        %v555 = vunpack.c.l.b16 %v507
        %v556 = vunpack.c.l.b16 %v508
        %v557 = vunpack.c.l.b16 %v509
        %v558 = vunpack.c.l.b16 %v510
        %v559 = vpack.c.b16 %v544, %v543
        %v560 = vpack.c.b16 %v546, %v545
        %v561 = vpack.c.b16 %v548, %v547
        %v562 = vpack.c.b16 %v550, %v549
        %v563 = vpack.c.b16 %v552, %v551
        %v564 = vpack.c.b16 %v554, %v553
        %v565 = vpack.c.b16 %v556, %v555
        %v566 = vpack.c.b16 %v558, %v557
        %v591 = vunpack.c.l.b16 %v511
        %v592 = vunpack.c.l.b16 %v512
        %v593 = vunpack.c.l.b16 %v513
        %v594 = vunpack.c.l.b16 %v514
        %v595 = vunpack.c.l.b16 %v515
        %v596 = vunpack.c.l.b16 %v516
        %v597 = vunpack.c.l.b16 %v517
        %v598 = vunpack.c.l.b16 %v518
        %v599 = vunpack.c.l.b16 %v519
        %v600 = vunpack.c.l.b16 %v520
        %v601 = vunpack.c.l.b16 %v521
        %v602 = vunpack.c.l.b16 %v522
        %v603 = vunpack.c.l.b16 %v523
        %v604 = vunpack.c.l.b16 %v524
        %v605 = vunpack.c.l.b16 %v525
        %v606 = vunpack.c.l.b16 %v526
        %v607 = vpack.c.b16 %v592, %v591
        %v608 = vpack.c.b16 %v594, %v593
        %v609 = vpack.c.b16 %v596, %v595
        %v610 = vpack.c.b16 %v598, %v597
        %v611 = vpack.c.b16 %v600, %v599
        %v612 = vpack.c.b16 %v602, %v601
        %v613 = vpack.c.b16 %v604, %v603
        %v614 = vpack.c.b16 %v606, %v605
        %623 = vmatprep.subr.bf16.mxu0 0
        %624 = vmatpush1.bf16.msra.mxu0 %v607
        %625 = vmatprep.subr.bf16.mxu0 0
        %626 = vmatpush1.bf16.msra.mxu0 %v608
        %627 = vmatprep.subr.bf16.mxu0 0
        %628 = vmatpush1.bf16.msra.mxu0 %v609
        %629 = vmatprep.subr.bf16.mxu0 0
        %630 = vmatpush1.bf16.msra.mxu0 %v610
        %631 = vmatprep.subr.bf16.mxu0 0
        %632 = vmatpush1.bf16.msra.mxu0 %v611
        %633 = vmatprep.subr.bf16.mxu0 0
        %634 = vmatpush1.bf16.msra.mxu0 %v612
        %635 = vmatprep.subr.bf16.mxu0 0
        %636 = vmatpush1.bf16.msra.mxu0 %v613
        %637 = vmatprep.subr.bf16.mxu0 0
        %638 = vmatpush1.bf16.msra.mxu0 %v614
        %639 = vmatprep.subr.bf16.mxu0 0
        %640 = vmatpush1.bf16.msra.mxu0 0
        %641 = vmatprep.subr.bf16.mxu0 0
        %642 = vmatpush1.bf16.msra.mxu0 0
        %643 = vmatprep.subr.bf16.mxu0 0
        %644 = vmatpush1.bf16.msra.mxu0 0
        %645 = vmatprep.subr.bf16.mxu0 0
        %646 = vmatpush1.bf16.msra.mxu0 0
        %647 = vmatprep.subr.bf16.mxu0 0
        %648 = vmatpush1.bf16.msra.mxu0 0
        %649 = vmatprep.subr.bf16.mxu0 0
        %650 = vmatpush1.bf16.msra.mxu0 0
        %651 = vmatprep.subr.bf16.mxu0 0
        %652 = vmatpush1.bf16.msra.mxu0 0
        %653 = vmatprep.subr.bf16.mxu0 0
        %654 = vmatpush1.bf16.msra.mxu0 0
        %655 = vmatprep.mubr.bf16.mxu0 0
        %656 = vmatmul.mubr.bf16.gmra.mrb[0].mxu0 %v559
        %v657 = vpop.f32.mrb[0].mxu0
        %v658 = vadd.f32 0.0, %v657
        %v659 = vpop.f32.mrb[0].mxu0
        %v660 = vpop.f32.mrb[0].mxu0
        %v661 = vadd.f32 0.0, %v660
        %v662 = vpop.f32.mrb[0].mxu0
        %663 = vmatprep.mubr.bf16.mxu0 0
        %664 = vmatmul.mubr.bf16.gmra.mrb[0].mxu0 %v560
        %v665 = vpop.f32.mrb[0].mxu0
        %v666 = vadd.f32 0.0, %v665
        %v667 = vpop.f32.mrb[0].mxu0
        %v668 = vpop.f32.mrb[0].mxu0
        %v669 = vadd.f32 0.0, %v668
        %v670 = vpop.f32.mrb[0].mxu0
        %671 = vmatprep.mubr.bf16.mxu0 0
        %672 = vmatmul.mubr.bf16.gmra.mrb[0].mxu0 %v561
        %v673 = vpop.f32.mrb[0].mxu0
        %v674 = vadd.f32 0.0, %v673
        %v675 = vpop.f32.mrb[0].mxu0
        %v676 = vpop.f32.mrb[0].mxu0
        %v677 = vadd.f32 0.0, %v676
        %v678 = vpop.f32.mrb[0].mxu0
        %679 = vmatprep.mubr.bf16.mxu0 0
        %680 = vmatmul.mubr.bf16.gmra.mrb[0].mxu0 %v562
        %v681 = vpop.f32.mrb[0].mxu0
        %v682 = vadd.f32 0.0, %v681
        %v683 = vpop.f32.mrb[0].mxu0
        %v684 = vpop.f32.mrb[0].mxu0
        %v685 = vadd.f32 0.0, %v684
        %v686 = vpop.f32.mrb[0].mxu0
        %687 = vmatprep.mubr.bf16.mxu0 0
        %688 = vmatmul.mubr.bf16.gmra.mrb[0].mxu0 %v563
        %v689 = vpop.f32.mrb[0].mxu0
        %v690 = vadd.f32 0.0, %v689
        %v691 = vpop.f32.mrb[0].mxu0
        %v692 = vpop.f32.mrb[0].mxu0
        %v693 = vadd.f32 0.0, %v692
        %v694 = vpop.f32.mrb[0].mxu0
        %695 = vmatprep.mubr.bf16.mxu0 0
        %696 = vmatmul.mubr.bf16.gmra.mrb[0].mxu0 %v564
        %v697 = vpop.f32.mrb[0].mxu0
        %v698 = vadd.f32 0.0, %v697
        %v699 = vpop.f32.mrb[0].mxu0
        %v700 = vpop.f32.mrb[0].mxu0
        %v701 = vadd.f32 0.0, %v700
        %v702 = vpop.f32.mrb[0].mxu0
        %703 = vmatprep.mubr.bf16.mxu0 0
        %704 = vmatmul.mubr.bf16.gmra.mrb[0].mxu0 %v565
        %v705 = vpop.f32.mrb[0].mxu0
        %v706 = vadd.f32 0.0, %v705
        %v707 = vpop.f32.mrb[0].mxu0
        %v708 = vpop.f32.mrb[0].mxu0
        %v709 = vadd.f32 0.0, %v708
        %v710 = vpop.f32.mrb[0].mxu0
        %711 = vmatprep.mubr.bf16.mxu0 0
        %712 = vmatmul.mubr.bf16.gmra.mrb[0].mxu0 %v566
        %v713 = vpop.f32.mrb[0].mxu0
        %v714 = vadd.f32 0.0, %v713
        %v715 = vpop.f32.mrb[0].mxu0
        %v716 = vpop.f32.mrb[0].mxu0
        %v717 = vadd.f32 0.0, %v716
        %v718 = vpop.f32.mrb[0].mxu0
        %719 = vdwg.mxu0
        %v720 = vadd.f32 %v479, %v658
        %v721 = vadd.f32 %v480, %v661
        %v722 = vadd.f32 %v481, %v666
        %v723 = vadd.f32 %v482, %v669
        %v724 = vadd.f32 %v483, %v674
        %v725 = vadd.f32 %v484, %v677
        %v726 = vadd.f32 %v485, %v682
        %v727 = vadd.f32 %v486, %v685
        %v728 = vadd.f32 %v487, %v690
        %v729 = vadd.f32 %v488, %v693
        %v730 = vadd.f32 %v489, %v698
        %v731 = vadd.f32 %v490, %v701
        %v732 = vadd.f32 %v491, %v706
        %v733 = vadd.f32 %v492, %v709
        %v734 = vadd.f32 %v493, %v714
        %v735 = vadd.f32 %v494, %v717
        %736 = vst [vmem:[#allocation7] sm:$0xff] %v720
        %737 = vst [vmem:[#allocation7 + $0x8] sm:$0xff] %v721
        %738 = vst [vmem:[#allocation7 + $0x10] sm:$0xff] %v722
        %739 = vst [vmem:[#allocation7 + $0x18] sm:$0xff] %v723
        %740 = vst [vmem:[#allocation7 + $0x20] sm:$0xff] %v724
        %741 = vst [vmem:[#allocation7 + $0x28] sm:$0xff] %v725
        %742 = vst [vmem:[#allocation7 + $0x30] sm:$0xff] %v726
        %743 = vst [vmem:[#allocation7 + $0x38] sm:$0xff] %v727
        %744 = vst [vmem:[#allocation7 + $0x40] sm:$0xff] %v728
        %745 = vst [vmem:[#allocation7 + $0x48] sm:$0xff] %v729
        %746 = vst [vmem:[#allocation7 + $0x50] sm:$0xff] %v730
        %747 = vst [vmem:[#allocation7 + $0x58] sm:$0xff] %v731
        %748 = vst [vmem:[#allocation7 + $0x60] sm:$0xff] %v732
        %749 = vst [vmem:[#allocation7 + $0x68] sm:$0xff] %v733
        %750 = vst [vmem:[#allocation7 + $0x70] sm:$0xff] %v734
        %751 = vst [vmem:[#allocation7 + $0x78] sm:$0xff] %v735
        // Predicated region
        $region49: #{tpu_custom_call.1} parent=35 // pred_check
          %p752 = pneg %p178
        $region50: #{tpu_custom_call.1} parent=35 // pred_check_branch
          %754 = sbr.rel (%p752) target = $region52
        $region51: #{tpu_custom_call.1} parent=35 // pred_region
          %s755 = smul.u32 16, %s26
          %s757 = ssub.s32 2048, 2048
          %758 = vsyncadd [#allocation4], %s757
          %s759 = sadd.s32 %s27, %s755
          %s760 = smul.addr %s759, 128
          %s761 = scalar_lea.hbm %s4, %s760
          %s762 = sshll.u32 [#allocation7], 4
          %s763 = int_to_ptr.vmem [resolvable:$true] %s762
          %768 = dma.vmem_to_hbm [thread:$0]  %s763, 2048, %s761, [#allocation4], 128, 128, 8
        $region52: #{tpu_custom_call.1} parent=35 // pred_fallthru
          _
        // Predicated region
        $region53: #{tpu_custom_call.1} parent=35 // pred_check
          %p769 = pneg %p178
        $region54: #{tpu_custom_call.1} parent=35 // pred_check_branch
          %771 = sbr.rel (%p769) target = $region56
        $region55: #{tpu_custom_call.1} parent=35 // pred_region
          %772 = dma.done [#allocation4], 2048
        $region56: #{tpu_custom_call.1} parent=35 // pred_fallthru
          _
      $region36: #{tpu_custom_call.1} parent=5 // pred_fallthru
        _
      %p773 = scmp.le.s32.totalorder 2, %s15
      // Predicated region
      $region57: #{tpu_custom_call.1} parent=5 // pred_check
        %p774 = pneg %p773
      $region58: #{tpu_custom_call.1} parent=5 // pred_check_branch
        %776 = sbr.rel (%p774) target = $region60
      $region59: #{tpu_custom_call.1} parent=5 // pred_region
        %s777 = ssub.s32 %s15, 2
      $region60: #{tpu_custom_call.1} parent=5 // pred_fallthru
        _
    $region6: #{tpu_custom_call.1} parent=1 // loop_footer
      %s19 = sadd.s32 1, %s15
    $region7: #{tpu_custom_call.1} parent=1 // loop_footer_branch
      %14 = sbr.rel target = $region3
    $region8: #{tpu_custom_call.1} parent=1 // loop_exit
      _
    %778 = vsyncpa [#allocation3], 1
    %s779 = scalar_lea.sflag [#allocation3], 1
    %780 = vsyncpa %s779, 1
    %781 = vsyncpa [#allocation6], 1
    %782 = vsyncpa [#allocation4], 1
    %s783 = scalar_lea.sflag [#allocation4], 1
    %784 = vsyncpa %s783, 1

</llo_original>
